<compile_context>
chip_gen: v5e
topology: v5e:2x2
jax: 0.10.0
libtpu: 0.0.40
codegen_flags: <defaults>
</compile_context>

<pallas_src>
import jax
import jax.numpy as jnp
from jax import lax
from jax.experimental import pallas as pl
from jax.experimental.pallas import tpu as pltpu


def linear_t_kernel(xt_ref, w_ref, b_ref, ot_ref):
    # xt_ref: (K, TB) activations, batch on the lane axis (lane-dense).
    # w_ref:  (N, K)  weight in PyTorch layout == natural MXU LHS here.
    # b_ref:  (N, 1)  bias column, broadcast along lanes.
    # ot_ref: (N, TB) y.T block -> unmasked, lane-dense stores.
    acc = lax.dot_general(
        w_ref[...], xt_ref[...],
        dimension_numbers=(((1,), (0,)), ((), ())),   # standard (M,K) x (K,N)
        preferred_element_type=jnp.float32,
    )
    ot_ref[...] = (acc + b_ref[...]).astype(ot_ref.dtype)


def linear_pallas(x, weight, bias, *, tile_b=8192, gridless_max_b=1024,
                  transposed_output=False):
    """NetworkB.forward: x @ weight.T + bias.

    x: (B, K); weight: (N, K) (PyTorch layout); bias: (N,).
    Returns (B, N); with transposed_output=True returns y.T == (N, B) so a
    fused consumer can keep the lane-dense (features, batch) layout.
    """
    B, K = x.shape
    N, K_w = weight.shape
    assert K == K_w, "weight must be (out_features, in_features)"

    x_t = x.T                    # (K, B): features on sublanes, batch on lanes
    b2d = bias.reshape(N, 1)     # 2-D column for TPU (sublane, lane) layout

    cost = pl.CostEstimate(
        flops=2 * B * K * N,
        bytes_accessed=(B * K + N * K + N + B * N) * x.dtype.itemsize,
        transcendentals=0,
    )

    if B <= gridless_max_b:
        # Small-batch fast path: no grid -> no software-pipeline prologue /
        # epilogue, no double-buffering; all operands live in VMEM.
        y_t = pl.pallas_call(
            linear_t_kernel,
            out_shape=jax.ShapeDtypeStruct((N, B), x.dtype),
            cost_estimate=cost,
        )(x_t, weight, b2d)
        return y_t if transposed_output else y_t.T

    # ---- batch-tiled path --------------------------------------------------
    # Batch is the lane axis now, so tiles must be 128-lane granular (this is
    # stricter than the %8 rule and also covers bf16 packing).
    assert tile_b % 128 == 0, "tile_b must be a multiple of 128 (batch is on lanes)"

    # v7x megacore balance: always >= 2 blocks, all near-equal, so both
    # TensorCores get comparable work under dimension_semantics=("parallel",).
    n_blocks = max(2, pl.cdiv(B, tile_b))
    tb = ((pl.cdiv(B, n_blocks) + 127) // 128) * 128
    grid_b = pl.cdiv(B, tb)

    # Actual double-buffered VMEM footprint (padding is sublane-only: the
    # batch/lane axis is dense).  ~2.6 MiB at tb=8192 -> fits every
    # generation's scoped-VMEM default; add headroom for Mosaic scratch.
    def _pad8(n):
        return ((n + 7) // 8) * 8
    itemsize = x.dtype.itemsize
    footprint = (
        2 * _pad8(K) * tb * itemsize      # x.T input tiles (double-buffered)
        + 2 * _pad8(N) * tb * itemsize    # y.T output tiles (double-buffered)
        + 4 * _pad8(N) * 128 * 4          # weight + bias (VMEM-resident)
    )
    vmem_limit = int(footprint + (8 << 20))

    y_t = pl.pallas_call(
        linear_t_kernel,
        out_shape=jax.ShapeDtypeStruct((N, B), x.dtype),
        grid_spec=pl.GridSpec(
            grid=(grid_b,),
            in_specs=[
                pl.BlockSpec((K, tb), lambda i: (0, i)),   # x.T: tile the batch lanes
                pl.BlockSpec((N, K), lambda i: (0, 0)),    # weight: VMEM-resident
                pl.BlockSpec((N, 1), lambda i: (0, 0)),    # bias:   VMEM-resident
            ],
            out_specs=pl.BlockSpec((N, tb), lambda i: (0, i)),
        ),
        compiler_params=pltpu.CompilerParams(
            dimension_semantics=("parallel",),   # megacore-shardable batch axis
            vmem_limit_bytes=vmem_limit,
        ),
        cost_estimate=cost,
    )(x_t, weight, b2d)
    return y_t if transposed_output else y_t.T


if __name__ == "__main__":
    key = jax.random.PRNGKey(0)
    k_x, k_w, k_b, k_x2, k_x3 = jax.random.split(key, 5)

    in_features, out_features = 20, 10

    # Deterministic parameter init (mimics nn.Linear uniform(-1/sqrt(fan_in), +)).
    bound = 1.0 / (in_features ** 0.5)
    weight = jax.random.uniform(
        k_w, (out_features, in_features), jnp.float32, -bound, bound)
    bias = jax.random.uniform(
        k_b, (out_features,), jnp.float32, -bound, bound)

    # 1) Small-batch grid-less path (the module's typical usage).
    x = jax.random.normal(k_x, (8, in_features), jnp.float32)
    out = linear_pallas(x, weight, bias)
    jax.block_until_ready(out)
    ref = x @ weight.T + bias
    assert out.shape == (8, out_features)
    assert jnp.allclose(out, ref, atol=1e-5, rtol=1e-5)

    # 2) Batch-tiled path, exact tiling (forced with a tiny tile / threshold).
    x2 = jax.random.normal(k_x2, (512, in_features), jnp.float32)
    out2 = linear_pallas(x2, weight, bias, tile_b=128, gridless_max_b=0)
    jax.block_until_ready(out2)
    ref2 = x2 @ weight.T + bias
    assert out2.shape == (512, out_features)
    assert jnp.allclose(out2, ref2, atol=1e-5, rtol=1e-5)

    # 3) Ragged batch (B % tile != 0) -> partial last block, masked writeback.
    x3 = jax.random.normal(k_x3, (259, in_features), jnp.float32)
    out3 = linear_pallas(x3, weight, bias, tile_b=128, gridless_max_b=0)
    jax.block_until_ready(out3)
    ref3 = x3 @ weight.T + bias
    assert out3.shape == (259, out_features)
    assert jnp.allclose(out3, ref3, atol=1e-5, rtol=1e-5)

    print("KERNEL_OK")
</pallas_src>

<mosaic_0001>
module attributes {stable_mosaic.version = 11 : i64} {
  func.func @linear_t_kernel(%arg0: memref<20x8xf32, #tpu.memory_space<vmem>>, %arg1: memref<10x20xf32, #tpu.memory_space<vmem>>, %arg2: memref<10x1xf32, #tpu.memory_space<vmem>>, %arg3: memref<10x8xf32, #tpu.memory_space<vmem>>) attributes {dimension_semantics = [], scalar_prefetch = 0 : i64, scratch_operands = 0 : i64, tpu.core_type = #tpu.core_type<tc>} {
    %c0 = arith.constant 0 : index
    %c0_0 = arith.constant 0 : index
    %0 = vector.load %arg1[%c0, %c0_0] : memref<10x20xf32, #tpu.memory_space<vmem>>, vector<10x20xf32>
    %c0_1 = arith.constant 0 : index
    %c0_2 = arith.constant 0 : index
    %1 = vector.load %arg0[%c0_1, %c0_2] : memref<20x8xf32, #tpu.memory_space<vmem>>, vector<20x8xf32>
    %cst = arith.constant dense<0.000000e+00> : vector<10x8xf32>
    %2 = tpu.matmul %0, %1, %cst {dimension_numbers = #tpu.dot_dimension_numbers<[1], [0], [0], [1], [0, 0, 1, 1], [], []>} : vector<10x20xf32>, vector<20x8xf32>, vector<10x8xf32> -> vector<10x8xf32>
    %c0_3 = arith.constant 0 : index
    %c0_4 = arith.constant 0 : index
    %3 = vector.load %arg2[%c0_3, %c0_4] : memref<10x1xf32, #tpu.memory_space<vmem>>, vector<10x1xf32>
    %4 = vector.broadcast %3 : vector<10x1xf32> to vector<10x8xf32>
    %5 = arith.addf %2, %4 : vector<10x8xf32>
    %c0_5 = arith.constant 0 : index
    %c0_6 = arith.constant 0 : index
    %6 = vector.load %arg3[%c0_5, %c0_6] : memref<10x8xf32, #tpu.memory_space<vmem>>, vector<10x8xf32>
    tpu.vector_store %arg3[%c0_5, %c0_6], %5 {strides = array<i32>} : memref<10x8xf32, #tpu.memory_space<vmem>>, vector<10x8xf32>,
    return
  }
}

</mosaic_0001>

<llo_original>
// kernel: tpu_custom_call.1
$region0: #{tpu_custom_call.1}
  #allocation0 [shape = 'u32[]', space=smem, size = 0x4, offset = 0x4, fixed_abs, tag = 'smem constant byte address 0x4 - core index']
  #allocation1 [shape = 'u32[72,128]{1,0:T(1,128)}', space=vmem, size = 0x9000, scoped, tag = 'internal scratch']
  %s0 = inlined_call_operand.vmem [shape: f32[20,8], index: 0, kind: input, shape index: {}]
  %s1 = inlined_call_operand.vmem [shape: f32[10,20], index: 1, kind: input, shape index: {}]
  %s2 = inlined_call_operand.vmem [shape: f32[10,1], index: 2, kind: input, shape index: {}]
  %s3 = inlined_call_operand.vmem [shape: f32[10,8], index: 3, kind: output, shape index: {}]
  %s4 = sld [smem:[#allocation0]]
  $region22: #{tpu_custom_call.1} parent=0
    _
  %s6 = ssub.s32 1, %s4
  %s7 = scalar_select 0, %s6, %s4
  // Predicated region
  $region2: #{tpu_custom_call.1} parent=0 // pred_check
    _
  $region3: #{tpu_custom_call.1} parent=0 // pred_check_branch
    %9 = sbr.rel (0) target = $region5
  $region4: #{tpu_custom_call.1} parent=0 // pred_region
    _
  $region5: #{tpu_custom_call.1} parent=0 // pred_fallthru
    _
  // Predicated region
  $region6: #{tpu_custom_call.1} parent=0 // pred_check
    _
  $region7: #{tpu_custom_call.1} parent=0 // pred_check_branch
    %11 = sbr.rel (0) target = $region9
  $region8: #{tpu_custom_call.1} parent=0 // pred_region
    _
  $region9: #{tpu_custom_call.1} parent=0 // pred_fallthru
    _
  // Predicated region
  $region10: #{tpu_custom_call.1} parent=0 // pred_check
    _
  $region11: #{tpu_custom_call.1} parent=0 // pred_check_branch
    %13 = sbr.rel (0) target = $region13
  $region12: #{tpu_custom_call.1} parent=0 // pred_region
    _
  $region13: #{tpu_custom_call.1} parent=0 // pred_fallthru
    _
  %v14 = vld [vmem:[%s1] sm:$0xff]
  %v15 = vld [vmem:[%s1 + $0x8] sm:$0x3]
  %v16 = vld [vmem:[%s0] sm:$0xff]
  %v17 = vld [vmem:[%s0 + $0x8] sm:$0xff]
  %v18 = vld [vmem:[%s0 + $0x10] sm:$0xf]
  %v19 = vld [vmem:[%s2] sm:$0xff]
  %v20 = vld [vmem:[%s2 + $0x8] sm:$0x3]
  %22 = vset.pattern.permute.xlu0 0
  %23 = vperm.xlu0 %22, %v19
  %v24 = vpop.permute.xlu0 %23
  %27 = vset.pattern.permute.xlu0 0
  %28 = vperm.xlu0 %27, %v20
  %v29 = vpop.permute.xlu0 %28
  %vm31 = vcmask 162816
  %v33 = vsel %vm31, %v14, 0
  %v36 = vsel %vm31, %v15, 0
  %vm38 = vcmask 1043456
  %v40 = vsel %vm38, %v18, 0
  %42 = vmatpush.msra.mxu0 0.0
  %43 = vmatpush.msra.mxu0 0.0
  %44 = vmatpush.msra.mxu0 0.0
  %45 = vmatpush.msra.mxu0 0.0
  %46 = vmatpush.msra.mxu0 0.0
  %47 = vmatpush.msra.mxu0 0.0
  %48 = vmatpush.msra.mxu0 0.0
  %49 = vmatpush.msra.mxu0 0.0
  %50 = vmatpush.msra.mxu0 0.0
  %51 = vmatpush.msra.mxu0 0.0
  %52 = vmatpush.msra.mxu0 0.0
  %53 = vmatpush.msra.mxu0 0.0
  %54 = vmatpush.msra.mxu0 0.0
  %55 = vmatpush.msra.mxu0 %v40
  %56 = vmatpush.msra.mxu0 %v17
  %57 = vmatpush.msra.mxu0 %v16
  %58 = vmatmul.f32.gmra.mxu0 %v33
  %v59 = vpop.f32.mrf.mxu0
  %v60 = vadd.f32 %v24, %v59
  %61 = vmatmul.f32.gmra.mxu0 %v36
  %v62 = vpop.f32.mrf.mxu0
  %v63 = vadd.f32 %v29, %v62
  %64 = vdwg.mxu0
  %vm65 = vcmask 64512
  %66 = vst.msk [vmem:[%s3] sm:$0xff] %vm65, %v60
  %vm67 = vcmask 58368
  %68 = vst.msk [vmem:[%s3 + $0x8] sm:$0x3] %vm67, %v63
  // Predicated region
  $region14: #{tpu_custom_call.1} parent=0 // pred_check
    _
  $region15: #{tpu_custom_call.1} parent=0 // pred_check_branch
    %70 = sbr.rel (0) target = $region17
  $region16: #{tpu_custom_call.1} parent=0 // pred_region
    _
  $region17: #{tpu_custom_call.1} parent=0 // pred_fallthru
    _
  // Predicated region
  $region18: #{tpu_custom_call.1} parent=0 // pred_check
    _
  $region19: #{tpu_custom_call.1} parent=0 // pred_check_branch
    %72 = sbr.rel (0) target = $region21
  $region20: #{tpu_custom_call.1} parent=0 // pred_region
    _
  $region21: #{tpu_custom_call.1} parent=0 // pred_fallthru
    _

</llo_original>
